<compile_context>
chip_gen: v5e
topology: v5e:2x2
jax: 0.10.0
libtpu: 0.0.40
codegen_flags: <defaults>
</compile_context>

<pallas_src>
import jax
import jax.numpy as jnp
from jax.experimental import pallas as pl
from jax.experimental.pallas import tpu as pltpu


def _round_up(x, m):
    return ((x + m - 1) // m) * m


# ----------------------------------------------------------------------------
# Kernel: one row-tile grid step runs the whole 3-layer MLP for one branch.
#   x_ref : (tile, i_dim) bf16      w1_ref: (i_dim, h_dim) bf16
#   w2_ref: (h_dim, h_dim) bf16     w3_ref: (h_dim, o_dim) bf16
#   b*_ref: (1, h_dim)/(1, o_dim) f32      o_ref: (tile, o_dim) f32
# Matmuls run bf16 x bf16 -> f32 on the MXU; bias add + ReLU stay in f32.
# ----------------------------------------------------------------------------
def _mlp3_kernel(x_ref, w1_ref, w2_ref, w3_ref, b1_ref, b2_ref, b3_ref, o_ref):
    h1 = jnp.dot(x_ref[...], w1_ref[...],
                 preferred_element_type=jnp.float32) + b1_ref[...]
    h1 = jnp.maximum(h1, 0.0).astype(jnp.bfloat16)

    h2 = jnp.dot(h1, w2_ref[...],
                 preferred_element_type=jnp.float32) + b2_ref[...]
    h2 = jnp.maximum(h2, 0.0).astype(jnp.bfloat16)

    h3 = jnp.dot(h2, w3_ref[...],
                 preferred_element_type=jnp.float32) + b3_ref[...]
    o_ref[...] = jnp.maximum(h3, 0.0).astype(o_ref.dtype)


def _mlp3_branch_forward(x, w1, w2, w3, b1, b2, b3, *, tile_rows=512):
    """Run one branch's 3-layer ReLU MLP.  x: (N, i_dim) f32.  Returns (N, o_dim) f32.

    w1/w2/w3 are bf16 (in, out) weights; b1/b2/b3 are f32 (1, out) biases.
    """
    n, i_dim = x.shape
    h_dim = w1.shape[1]
    o_dim = w3.shape[1]

    x_bf = x.astype(jnp.bfloat16)

    if n <= tile_rows:
        # Single block == full array: no row padding, no post-kernel slice.
        tile, n_pad = n, n
        x_in = x_bf
    else:
        # Tile rows; enforce bf16 sublane multiple (16). Pad rows to a tile
        # multiple (cheap: i_dim-wide bf16 rows, no lane inflation).
        tile = max(16, (tile_rows // 16) * 16)
        n_pad = _round_up(n, tile)
        x_in = jnp.pad(x_bf, ((0, n_pad - n), (0, 0)))

    grid = (n_pad // tile,)

    out = pl.pallas_call(
        _mlp3_kernel,
        out_shape=jax.ShapeDtypeStruct((n_pad, o_dim), jnp.float32),
        grid_spec=pltpu.PrefetchScalarGridSpec(
            num_scalar_prefetch=0,
            grid=grid,
            in_specs=[
                # current row tile of the input
                pl.BlockSpec((tile, i_dim), lambda i: (i, 0)),
                # weights / biases: resident across all row tiles
                pl.BlockSpec((i_dim, h_dim), lambda i: (0, 0)),
                pl.BlockSpec((h_dim, h_dim), lambda i: (0, 0)),
                pl.BlockSpec((h_dim, o_dim), lambda i: (0, 0)),
                pl.BlockSpec((1, h_dim), lambda i: (0, 0)),
                pl.BlockSpec((1, h_dim), lambda i: (0, 0)),
                pl.BlockSpec((1, o_dim), lambda i: (0, 0)),
            ],
            out_specs=pl.BlockSpec((tile, o_dim), lambda i: (i, 0)),
        ),
        compiler_params=pltpu.CompilerParams(
            dimension_semantics=("parallel",),
        ),
    )(x_in, w1, w2, w3, b1, b2, b3)

    return out if n_pad == n else out[:n]


def _init_linear(key, in_features, out_features, dtype=jnp.float32):
    """Deterministic init mimicking torch nn.Linear (uniform +-1/sqrt(fan_in)).
    Weight stored as (in_features, out_features) for x @ W + b."""
    kw, kb = jax.random.split(key)
    bound = 1.0 / (in_features ** 0.5)
    w = jax.random.uniform(kw, (in_features, out_features), dtype,
                           minval=-bound, maxval=bound)
    b = jax.random.uniform(kb, (out_features,), dtype,
                           minval=-bound, maxval=bound)
    return w, b


class LocalNITCLayerPallas:
    """JAX/Pallas port of LocalNITCLayer: two parallel 3-layer ReLU MLPs.
    Each branch is one fused pallas_call (bf16 MXU operands, f32 accumulate)."""

    def __init__(self, i_dim, h_dim, o_dim, key):
        self.i_dim, self.h_dim, self.o_dim = i_dim, h_dim, o_dim
        keys = jax.random.split(key, 6)
        # f32 master weights (kept for reference / export)
        self.m1_w, self.m1_b = _init_linear(keys[0], i_dim, h_dim)
        self.m2_w, self.m2_b = _init_linear(keys[1], h_dim, h_dim)
        self.m3_w, self.m3_b = _init_linear(keys[2], h_dim, o_dim)
        self.d1_w, self.d1_b = _init_linear(keys[3], i_dim, h_dim)
        self.d2_w, self.d2_b = _init_linear(keys[4], h_dim, h_dim)
        self.d3_w, self.d3_b = _init_linear(keys[5], h_dim, o_dim)

        bf = jnp.bfloat16
        # bf16 weights for the MXU; biases stay f32 (added after f32 accumulate)
        self.m_weights = (self.m1_w.astype(bf), self.m2_w.astype(bf),
                          self.m3_w.astype(bf))
        self.d_weights = (self.d1_w.astype(bf), self.d2_w.astype(bf),
                          self.d3_w.astype(bf))
        self.m_biases = (self.m1_b.reshape(1, -1), self.m2_b.reshape(1, -1),
                         self.m3_b.reshape(1, -1))
        self.d_biases = (self.d1_b.reshape(1, -1), self.d2_b.reshape(1, -1),
                         self.d3_b.reshape(1, -1))

    def __call__(self, inputs_row, inputs_col, *, tile_rows=512):
        m_embedding = _mlp3_branch_forward(
            inputs_row, *self.m_weights, *self.m_biases, tile_rows=tile_rows)
        d_embedding = _mlp3_branch_forward(
            inputs_col, *self.d_weights, *self.d_biases, tile_rows=tile_rows)
        return m_embedding, d_embedding


# ------------------------------ references ----------------------------------
def _reference_mlp3_f32(x, w1, b1, w2, b2, w3, b3):
    h1 = jnp.maximum(x @ w1 + b1, 0.0)
    h2 = jnp.maximum(h1 @ w2 + b2, 0.0)
    return jnp.maximum(h2 @ w3 + b3, 0.0)


def _reference_mlp3_bf16(x, w1, b1, w2, b2, w3, b3):
    """Same math as the kernel: bf16 matmul operands, f32 accumulate/bias/relu."""
    bf = jnp.bfloat16
    h1 = jnp.maximum(jnp.dot(x.astype(bf), w1.astype(bf),
                             preferred_element_type=jnp.float32) + b1, 0.0)
    h2 = jnp.maximum(jnp.dot(h1.astype(bf), w2.astype(bf),
                             preferred_element_type=jnp.float32) + b2, 0.0)
    return jnp.maximum(jnp.dot(h2.astype(bf), w3.astype(bf),
                               preferred_element_type=jnp.float32) + b3, 0.0)


if __name__ == "__main__":
    # Small shapes consistent with the module's forward:
    #   inputs_row: (N_m, i_dim), inputs_col: (N_d, i_dim)
    i_dim, h_dim, o_dim = 32, 64, 16
    n_row, n_col = 128, 64

    key = jax.random.PRNGKey(0)
    k_layer, k_row, k_col, k_big = jax.random.split(key, 4)

    layer = LocalNITCLayerPallas(i_dim, h_dim, o_dim, k_layer)

    inputs_row = jax.random.normal(k_row, (n_row, i_dim), jnp.float32)
    inputs_col = jax.random.normal(k_col, (n_col, i_dim), jnp.float32)

    m_emb, d_emb = layer(inputs_row, inputs_col)
    jax.block_until_ready((m_emb, d_emb))

    assert m_emb.shape == (n_row, o_dim) and d_emb.shape == (n_col, o_dim)

    # Exact-math check against a plain-JAX reference using the same bf16
    # operand / f32 accumulate recipe as the kernel.
    m_ref_bf = _reference_mlp3_bf16(inputs_row, layer.m1_w, layer.m1_b,
                                    layer.m2_w, layer.m2_b, layer.m3_w, layer.m3_b)
    d_ref_bf = _reference_mlp3_bf16(inputs_col, layer.d1_w, layer.d1_b,
                                    layer.d2_w, layer.d2_b, layer.d3_w, layer.d3_b)
    assert jnp.allclose(m_emb, m_ref_bf, atol=2e-2, rtol=2e-2)
    assert jnp.allclose(d_emb, d_ref_bf, atol=2e-2, rtol=2e-2)

    # Loose check against the full-f32 reference (bounds the bf16 quantization).
    m_ref = _reference_mlp3_f32(inputs_row, layer.m1_w, layer.m1_b,
                                layer.m2_w, layer.m2_b, layer.m3_w, layer.m3_b)
    d_ref = _reference_mlp3_f32(inputs_col, layer.d1_w, layer.d1_b,
                                layer.d2_w, layer.d2_b, layer.d3_w, layer.d3_b)
    assert jnp.allclose(m_emb, m_ref, atol=1e-1, rtol=1e-1)
    assert jnp.allclose(d_emb, d_ref, atol=1e-1, rtol=1e-1)

    # Exercise the tiled / row-padded path (N > tile_rows, N not a tile multiple).
    n_big = 1200
    big_rows = jax.random.normal(k_big, (n_big, i_dim), jnp.float32)
    m_big, _ = layer(big_rows, inputs_col, tile_rows=512)
    jax.block_until_ready(m_big)
    m_big_ref = _reference_mlp3_bf16(big_rows, layer.m1_w, layer.m1_b,
                                     layer.m2_w, layer.m2_b, layer.m3_w, layer.m3_b)
    assert m_big.shape == (n_big, o_dim)
    assert jnp.allclose(m_big, m_big_ref, atol=2e-2, rtol=2e-2)

    print("KERNEL_OK")
</pallas_src>

<mosaic_0001>
module attributes {stable_mosaic.version = 11 : i64} {
  func.func @_mlp3_kernel(%arg0: i32, %arg1: memref<128x32xbf16, #tpu.memory_space<vmem>>, %arg2: memref<32x64xbf16, #tpu.memory_space<vmem>>, %arg3: memref<64x64xbf16, #tpu.memory_space<vmem>>, %arg4: memref<64x16xbf16, #tpu.memory_space<vmem>>, %arg5: memref<1x64xf32, #tpu.memory_space<vmem>>, %arg6: memref<1x64xf32, #tpu.memory_space<vmem>>, %arg7: memref<1x16xf32, #tpu.memory_space<vmem>>, %arg8: memref<128x16xf32, #tpu.memory_space<vmem>>) attributes {dimension_semantics = [#tpu.dimension_semantics<parallel>], iteration_bounds = array<i64: 1>, scalar_prefetch = 0 : i64, scratch_operands = 0 : i64, tpu.core_type = #tpu.core_type<tc>, window_params = [{transform_indices = @transform_0, window_bounds = array<i64: 128, 32>}, {pipeline_mode = #tpu.pipeline_mode<synchronous>, transform_indices = @transform_1, window_bounds = array<i64: 32, 64>}, {pipeline_mode = #tpu.pipeline_mode<synchronous>, transform_indices = @transform_2, window_bounds = array<i64: 64, 64>}, {pipeline_mode = #tpu.pipeline_mode<synchronous>, transform_indices = @transform_3, window_bounds = array<i64: 64, 16>}, {pipeline_mode = #tpu.pipeline_mode<synchronous>, transform_indices = @transform_4, window_bounds = array<i64: 1, 64>}, {pipeline_mode = #tpu.pipeline_mode<synchronous>, transform_indices = @transform_5, window_bounds = array<i64: 1, 64>}, {pipeline_mode = #tpu.pipeline_mode<synchronous>, transform_indices = @transform_6, window_bounds = array<i64: 1, 16>}, {transform_indices = @transform_7, window_bounds = array<i64: 128, 16>}]} {
    %c0 = arith.constant 0 : index
    %c0_0 = arith.constant 0 : index
    %0 = vector.load %arg1[%c0, %c0_0] : memref<128x32xbf16, #tpu.memory_space<vmem>>, vector<128x32xbf16>
    %c0_1 = arith.constant 0 : index
    %c0_2 = arith.constant 0 : index
    %1 = vector.load %arg2[%c0_1, %c0_2] : memref<32x64xbf16, #tpu.memory_space<vmem>>, vector<32x64xbf16>
    %cst = arith.constant dense<0.000000e+00> : vector<128x64xf32>
    %2 = tpu.matmul %0, %1, %cst {dimension_numbers = #tpu.dot_dimension_numbers<[1], [0], [0], [1], [0, 0, 1, 1], [], []>} : vector<128x32xbf16>, vector<32x64xbf16>, vector<128x64xf32> -> vector<128x64xf32>
    %c0_3 = arith.constant 0 : index
    %c0_4 = arith.constant 0 : index
    %3 = vector.load %arg5[%c0_3, %c0_4] : memref<1x64xf32, #tpu.memory_space<vmem>>, vector<1x64xf32>
    %4 = vector.broadcast %3 : vector<1x64xf32> to vector<128x64xf32>
    %5 = arith.addf %2, %4 : vector<128x64xf32>
    %cst_5 = arith.constant 0.000000e+00 : f32
    %6 = vector.broadcast %cst_5 : f32 to vector<128x64xf32>
    %7 = arith.maximumf %5, %6 : vector<128x64xf32>
    %8 = arith.truncf %7 : vector<128x64xf32> to vector<128x64xbf16>
    %c0_6 = arith.constant 0 : index
    %c0_7 = arith.constant 0 : index
    %9 = vector.load %arg3[%c0_6, %c0_7] : memref<64x64xbf16, #tpu.memory_space<vmem>>, vector<64x64xbf16>
    %cst_8 = arith.constant dense<0.000000e+00> : vector<128x64xf32>
    %10 = tpu.matmul %8, %9, %cst_8 {dimension_numbers = #tpu.dot_dimension_numbers<[1], [0], [0], [1], [0, 0, 1, 1], [], []>} : vector<128x64xbf16>, vector<64x64xbf16>, vector<128x64xf32> -> vector<128x64xf32>
    %c0_9 = arith.constant 0 : index
    %c0_10 = arith.constant 0 : index
    %11 = vector.load %arg6[%c0_9, %c0_10] : memref<1x64xf32, #tpu.memory_space<vmem>>, vector<1x64xf32>
    %12 = vector.broadcast %11 : vector<1x64xf32> to vector<128x64xf32>
    %13 = arith.addf %10, %12 : vector<128x64xf32>
    %cst_11 = arith.constant 0.000000e+00 : f32
    %14 = vector.broadcast %cst_11 : f32 to vector<128x64xf32>
    %15 = arith.maximumf %13, %14 : vector<128x64xf32>
    %16 = arith.truncf %15 : vector<128x64xf32> to vector<128x64xbf16>
    %c0_12 = arith.constant 0 : index
    %c0_13 = arith.constant 0 : index
    %17 = vector.load %arg4[%c0_12, %c0_13] : memref<64x16xbf16, #tpu.memory_space<vmem>>, vector<64x16xbf16>
    %cst_14 = arith.constant dense<0.000000e+00> : vector<128x16xf32>
    %18 = tpu.matmul %16, %17, %cst_14 {dimension_numbers = #tpu.dot_dimension_numbers<[1], [0], [0], [1], [0, 0, 1, 1], [], []>} : vector<128x64xbf16>, vector<64x16xbf16>, vector<128x16xf32> -> vector<128x16xf32>
    %c0_15 = arith.constant 0 : index
    %c0_16 = arith.constant 0 : index
    %19 = vector.load %arg7[%c0_15, %c0_16] : memref<1x16xf32, #tpu.memory_space<vmem>>, vector<1x16xf32>
    %20 = vector.broadcast %19 : vector<1x16xf32> to vector<128x16xf32>
    %21 = arith.addf %18, %20 : vector<128x16xf32>
    %cst_17 = arith.constant 0.000000e+00 : f32
    %22 = vector.broadcast %cst_17 : f32 to vector<128x16xf32>
    %23 = arith.maximumf %21, %22 : vector<128x16xf32>
    %c0_18 = arith.constant 0 : index
    %c0_19 = arith.constant 0 : index
    %24 = vector.load %arg8[%c0_18, %c0_19] : memref<128x16xf32, #tpu.memory_space<vmem>>, vector<128x16xf32>
    tpu.vector_store %arg8[%c0_18, %c0_19], %23 {strides = array<i32>} : memref<128x16xf32, #tpu.memory_space<vmem>>, vector<128x16xf32>,
    return
  }
  func.func @transform_0(%arg0: i32) -> (i32, i32) {
    %c0_i32 = arith.constant 0 : i32
    %c0_i32_0 = arith.constant 0 : i32
    return %arg0, %c0_i32 : i32, i32
  }
  func.func @transform_1(%arg0: i32) -> (i32, i32) {
    %c0_i32 = arith.constant 0 : i32
    %c0_i32_0 = arith.constant 0 : i32
    %c0_i32_1 = arith.constant 0 : i32
    return %c0_i32, %c0_i32_0 : i32, i32
  }
  func.func @transform_2(%arg0: i32) -> (i32, i32) {
    %c0_i32 = arith.constant 0 : i32
    %c0_i32_0 = arith.constant 0 : i32
    %c0_i32_1 = arith.constant 0 : i32
    return %c0_i32, %c0_i32_0 : i32, i32
  }
  func.func @transform_3(%arg0: i32) -> (i32, i32) {
    %c0_i32 = arith.constant 0 : i32
    %c0_i32_0 = arith.constant 0 : i32
    %c0_i32_1 = arith.constant 0 : i32
    return %c0_i32, %c0_i32_0 : i32, i32
  }
  func.func @transform_4(%arg0: i32) -> (i32, i32) {
    %c0_i32 = arith.constant 0 : i32
    %c0_i32_0 = arith.constant 0 : i32
    %c0_i32_1 = arith.constant 0 : i32
    return %c0_i32, %c0_i32_0 : i32, i32
  }
  func.func @transform_5(%arg0: i32) -> (i32, i32) {
    %c0_i32 = arith.constant 0 : i32
    %c0_i32_0 = arith.constant 0 : i32
    %c0_i32_1 = arith.constant 0 : i32
    return %c0_i32, %c0_i32_0 : i32, i32
  }
  func.func @transform_6(%arg0: i32) -> (i32, i32) {
    %c0_i32 = arith.constant 0 : i32
    %c0_i32_0 = arith.constant 0 : i32
    %c0_i32_1 = arith.constant 0 : i32
    return %c0_i32, %c0_i32_0 : i32, i32
  }
  func.func @transform_7(%arg0: i32) -> (i32, i32) {
    %c0_i32 = arith.constant 0 : i32
    %c0_i32_0 = arith.constant 0 : i32
    return %arg0, %c0_i32 : i32, i32
  }
}

</mosaic_0001>

<llo_original>
// kernel: tpu_custom_call.1
$region0: #{tpu_custom_call.1}
  #allocation0 [shape = 'u32[]', space=smem, size = 0x4, offset = 0x4, fixed_abs, tag = 'smem constant byte address 0x4 - core index']
  #allocation1 [shape = 'u32[72,128]{1,0:T(1,128)}', space=vmem, size = 0x9000, scoped, tag = 'internal scratch']
  %s0 = inlined_call_operand.vmem [shape: bf16[128,32], index: 0, kind: input, shape index: {}]
  %s1 = inlined_call_operand.vmem [shape: bf16[32,64], index: 1, kind: input, shape index: {}]
  %s2 = inlined_call_operand.vmem [shape: bf16[64,64], index: 2, kind: input, shape index: {}]
  %s3 = inlined_call_operand.vmem [shape: bf16[64,16], index: 3, kind: input, shape index: {}]
  %s4 = inlined_call_operand.vmem [shape: f32[1,64], index: 4, kind: input, shape index: {}]
  %s5 = inlined_call_operand.vmem [shape: f32[1,64], index: 5, kind: input, shape index: {}]
  %s6 = inlined_call_operand.vmem [shape: f32[1,16], index: 6, kind: input, shape index: {}]
  %s7 = inlined_call_operand.vmem [shape: f32[128,16], index: 7, kind: output, shape index: {}]
  %s8 = sld [smem:[#allocation0]]
  $region38: #{tpu_custom_call.1} parent=0
    _
  %s10 = ssub.s32 1, %s8
  %s11 = scalar_select 0, %s10, %s8
  // Predicated region
  $region2: #{tpu_custom_call.1} parent=0 // pred_check
    _
  $region3: #{tpu_custom_call.1} parent=0 // pred_check_branch
    %13 = sbr.rel (0) target = $region5
  $region4: #{tpu_custom_call.1} parent=0 // pred_region
    _
  $region5: #{tpu_custom_call.1} parent=0 // pred_fallthru
    _
  // Predicated region
  $region6: #{tpu_custom_call.1} parent=0 // pred_check
    _
  $region7: #{tpu_custom_call.1} parent=0 // pred_check_branch
    %15 = sbr.rel (0) target = $region9
  $region8: #{tpu_custom_call.1} parent=0 // pred_region
    _
  $region9: #{tpu_custom_call.1} parent=0 // pred_fallthru
    _
  // Predicated region
  $region10: #{tpu_custom_call.1} parent=0 // pred_check
    _
  $region11: #{tpu_custom_call.1} parent=0 // pred_check_branch
    %17 = sbr.rel (0) target = $region13
  $region12: #{tpu_custom_call.1} parent=0 // pred_region
    _
  $region13: #{tpu_custom_call.1} parent=0 // pred_fallthru
    _
  // Predicated region
  $region14: #{tpu_custom_call.1} parent=0 // pred_check
    _
  $region15: #{tpu_custom_call.1} parent=0 // pred_check_branch
    %19 = sbr.rel (0) target = $region17
  $region16: #{tpu_custom_call.1} parent=0 // pred_region
    _
  $region17: #{tpu_custom_call.1} parent=0 // pred_fallthru
    _
  // Predicated region
  $region18: #{tpu_custom_call.1} parent=0 // pred_check
    _
  $region19: #{tpu_custom_call.1} parent=0 // pred_check_branch
    %21 = sbr.rel (0) target = $region21
  $region20: #{tpu_custom_call.1} parent=0 // pred_region
    _
  $region21: #{tpu_custom_call.1} parent=0 // pred_fallthru
    _
  // Predicated region
  $region22: #{tpu_custom_call.1} parent=0 // pred_check
    _
  $region23: #{tpu_custom_call.1} parent=0 // pred_check_branch
    %23 = sbr.rel (0) target = $region25
  $region24: #{tpu_custom_call.1} parent=0 // pred_region
    _
  $region25: #{tpu_custom_call.1} parent=0 // pred_fallthru
    _
  // Predicated region
  $region26: #{tpu_custom_call.1} parent=0 // pred_check
    _
  $region27: #{tpu_custom_call.1} parent=0 // pred_check_branch
    %25 = sbr.rel (0) target = $region29
  $region28: #{tpu_custom_call.1} parent=0 // pred_region
    _
  $region29: #{tpu_custom_call.1} parent=0 // pred_fallthru
    _
  %v27 = vld [vmem:[%s0] sm:$0xf]
  %v28 = vld [vmem:[%s0 + $0x4] sm:$0xf]
  %v29 = vld [vmem:[%s0 + $0x8] sm:$0xf]
  %v30 = vld [vmem:[%s0 + $0xc] sm:$0xf]
  %v31 = vld [vmem:[%s0 + $0x10] sm:$0xf]
  %v32 = vld [vmem:[%s0 + $0x14] sm:$0xf]
  %v33 = vld [vmem:[%s0 + $0x18] sm:$0xf]
  %v34 = vld [vmem:[%s0 + $0x1c] sm:$0xf]
  %v35 = vld [vmem:[%s0 + $0x20] sm:$0xf]
  %v36 = vld [vmem:[%s0 + $0x24] sm:$0xf]
  %v37 = vld [vmem:[%s0 + $0x28] sm:$0xf]
  %v38 = vld [vmem:[%s0 + $0x2c] sm:$0xf]
  %v39 = vld [vmem:[%s0 + $0x30] sm:$0xf]
  %v40 = vld [vmem:[%s0 + $0x34] sm:$0xf]
  %v41 = vld [vmem:[%s0 + $0x38] sm:$0xf]
  %v42 = vld [vmem:[%s0 + $0x3c] sm:$0xf]
  %v43 = vld [vmem:[%s1] sm:$0xf]
  %v44 = vld [vmem:[%s1 + $0x4] sm:$0xf]
  %v45 = vld [vmem:[%s1 + $0x8] sm:$0xf]
  %v46 = vld [vmem:[%s1 + $0xc] sm:$0xf]
  %v47 = vld [vmem:[%s4] sm:$0x1]
  %v49 = vperm.slane %v47, 0
  %v67 = vunpack.c.l.b16 %v27
  %v68 = vunpack.c.l.b16 %v28
  %v69 = vunpack.c.l.b16 %v29
  %v70 = vunpack.c.l.b16 %v30
  %v71 = vunpack.c.l.b16 %v31
  %v72 = vunpack.c.l.b16 %v32
  %v73 = vunpack.c.l.b16 %v33
  %v74 = vunpack.c.l.b16 %v34
  %v75 = vunpack.c.l.b16 %v35
  %v76 = vunpack.c.l.b16 %v36
  %v77 = vunpack.c.l.b16 %v37
  %v78 = vunpack.c.l.b16 %v38
  %v79 = vunpack.c.l.b16 %v39
  %v80 = vunpack.c.l.b16 %v40
  %v81 = vunpack.c.l.b16 %v41
  %v82 = vunpack.c.l.b16 %v42
  %v83 = vpack.c.b16 %v68, %v67
  %v84 = vpack.c.b16 %v70, %v69
  %v85 = vpack.c.b16 %v72, %v71
  %v86 = vpack.c.b16 %v74, %v73
  %v87 = vpack.c.b16 %v76, %v75
  %v88 = vpack.c.b16 %v78, %v77
  %v89 = vpack.c.b16 %v80, %v79
  %v90 = vpack.c.b16 %v82, %v81
  %v95 = vunpack.c.l.b16 %v43
  %v96 = vunpack.c.l.b16 %v44
  %v97 = vunpack.c.l.b16 %v45
  %v98 = vunpack.c.l.b16 %v46
  %v99 = vpack.c.b16 %v96, %v95
  %v100 = vpack.c.b16 %v98, %v97
  %vm103 = vcmask 261120
  %v105 = vsel %vm103, %v83, 0
  %v108 = vsel %vm103, %v84, 0
  %v111 = vsel %vm103, %v85, 0
  %v114 = vsel %vm103, %v86, 0
  %v117 = vsel %vm103, %v87, 0
  %v120 = vsel %vm103, %v88, 0
  %v123 = vsel %vm103, %v89, 0
  %v126 = vsel %vm103, %v90, 0
  %128 = vmatpush.bf16.msra.mxu0 0
  %129 = vmatpush.bf16.msra.mxu0 0
  %130 = vmatpush.bf16.msra.mxu0 0
  %131 = vmatpush.bf16.msra.mxu0 0
  %132 = vmatpush.bf16.msra.mxu0 0
  %133 = vmatpush.bf16.msra.mxu0 0
  %134 = vmatpush.bf16.msra.mxu0 %v100
  %135 = vmatpush.bf16.msra.mxu0 %v99
  %136 = vmatmul.bf16.gmra.mxu0 %v105
  %v137 = vpop.f32.mrf.mxu0
  %v138 = vadd.f32 %v49, %v137
  %v139 = vpop.f32.mrf.mxu0
  %v140 = vadd.f32 %v49, %v139
  %141 = vmatmul.bf16.gmra.mxu0 %v108
  %v142 = vpop.f32.mrf.mxu0
  %v143 = vadd.f32 %v49, %v142
  %v144 = vpop.f32.mrf.mxu0
  %v145 = vadd.f32 %v49, %v144
  %146 = vmatmul.bf16.gmra.mxu0 %v111
  %v147 = vpop.f32.mrf.mxu0
  %v148 = vadd.f32 %v49, %v147
  %v149 = vpop.f32.mrf.mxu0
  %v150 = vadd.f32 %v49, %v149
  %151 = vmatmul.bf16.gmra.mxu0 %v114
  %v152 = vpop.f32.mrf.mxu0
  %v153 = vadd.f32 %v49, %v152
  %v154 = vpop.f32.mrf.mxu0
  %v155 = vadd.f32 %v49, %v154
  %156 = vmatmul.bf16.gmra.mxu0 %v117
  %v157 = vpop.f32.mrf.mxu0
  %v158 = vadd.f32 %v49, %v157
  %v159 = vpop.f32.mrf.mxu0
  %v160 = vadd.f32 %v49, %v159
  %161 = vmatmul.bf16.gmra.mxu0 %v120
  %v162 = vpop.f32.mrf.mxu0
  %v163 = vadd.f32 %v49, %v162
  %v164 = vpop.f32.mrf.mxu0
  %v165 = vadd.f32 %v49, %v164
  %166 = vmatmul.bf16.gmra.mxu0 %v123
  %v167 = vpop.f32.mrf.mxu0
  %v168 = vadd.f32 %v49, %v167
  %v169 = vpop.f32.mrf.mxu0
  %v170 = vadd.f32 %v49, %v169
  %171 = vmatmul.bf16.gmra.mxu0 %v126
  %v172 = vpop.f32.mrf.mxu0
  %v173 = vadd.f32 %v49, %v172
  %v174 = vpop.f32.mrf.mxu0
  %v175 = vadd.f32 %v49, %v174
  %176 = vdwg.mxu0
  %v177 = vmax.f32 %v138, 0.0
  %v178 = vmax.f32 %v140, 0.0
  %v179 = vmax.f32 %v143, 0.0
  %v180 = vmax.f32 %v145, 0.0
  %v181 = vmax.f32 %v148, 0.0
  %v182 = vmax.f32 %v150, 0.0
  %v183 = vmax.f32 %v153, 0.0
  %v184 = vmax.f32 %v155, 0.0
  %v185 = vmax.f32 %v158, 0.0
  %v186 = vmax.f32 %v160, 0.0
  %v187 = vmax.f32 %v163, 0.0
  %v188 = vmax.f32 %v165, 0.0
  %v189 = vmax.f32 %v168, 0.0
  %v190 = vmax.f32 %v170, 0.0
  %v191 = vmax.f32 %v173, 0.0
  %v192 = vmax.f32 %v175, 0.0
  %v193 = vpack.c.bf16 %v178, %v177
  %v194 = vpack.c.bf16 %v180, %v179
  %v195 = vpack.c.bf16 %v182, %v181
  %v196 = vpack.c.bf16 %v184, %v183
  %v197 = vpack.c.bf16 %v186, %v185
  %v198 = vpack.c.bf16 %v188, %v187
  %v199 = vpack.c.bf16 %v190, %v189
  %v200 = vpack.c.bf16 %v192, %v191
  %v201 = vld [vmem:[%s2] sm:$0xf]
  %v202 = vld [vmem:[%s2 + $0x4] sm:$0xf]
  %v203 = vld [vmem:[%s2 + $0x8] sm:$0xf]
  %v204 = vld [vmem:[%s2 + $0xc] sm:$0xf]
  %v205 = vld [vmem:[%s2 + $0x10] sm:$0xf]
  %v206 = vld [vmem:[%s2 + $0x14] sm:$0xf]
  %v207 = vld [vmem:[%s2 + $0x18] sm:$0xf]
  %v208 = vld [vmem:[%s2 + $0x1c] sm:$0xf]
  %v209 = vld [vmem:[%s5] sm:$0x1]
  %v211 = vperm.slane %v209, 0
  %v221 = vunpack.c.l.b16 %v201
  %v222 = vunpack.c.l.b16 %v202
  %v223 = vunpack.c.l.b16 %v203
  %v224 = vunpack.c.l.b16 %v204
  %v225 = vunpack.c.l.b16 %v205
  %v226 = vunpack.c.l.b16 %v206
  %v227 = vunpack.c.l.b16 %v207
  %v228 = vunpack.c.l.b16 %v208
  %v229 = vpack.c.b16 %v222, %v221
  %v230 = vpack.c.b16 %v224, %v223
  %v231 = vpack.c.b16 %v226, %v225
  %v232 = vpack.c.b16 %v228, %v227
  %vm237 = vcmask 523264
  %v239 = vsel %vm237, %v193, 0
  %v242 = vsel %vm237, %v194, 0
  %v245 = vsel %vm237, %v195, 0
  %v248 = vsel %vm237, %v196, 0
  %v251 = vsel %vm237, %v197, 0
  %v254 = vsel %vm237, %v198, 0
  %v257 = vsel %vm237, %v199, 0
  %v260 = vsel %vm237, %v200, 0
  %262 = vmatpush.bf16.msra.mxu0 0
  %263 = vmatpush.bf16.msra.mxu0 0
  %264 = vmatpush.bf16.msra.mxu0 0
  %265 = vmatpush.bf16.msra.mxu0 0
  %266 = vmatpush.bf16.msra.mxu0 %v232
  %267 = vmatpush.bf16.msra.mxu0 %v231
  %268 = vmatpush.bf16.msra.mxu0 %v230
  %269 = vmatpush.bf16.msra.mxu0 %v229
  %270 = vmatmul.bf16.gmra.mxu0 %v239
  %v271 = vpop.f32.mrf.mxu0
  %v272 = vadd.f32 %v211, %v271
  %v273 = vpop.f32.mrf.mxu0
  %v274 = vadd.f32 %v211, %v273
  %275 = vmatmul.bf16.gmra.mxu0 %v242
  %v276 = vpop.f32.mrf.mxu0
  %v277 = vadd.f32 %v211, %v276
  %v278 = vpop.f32.mrf.mxu0
  %v279 = vadd.f32 %v211, %v278
  %280 = vmatmul.bf16.gmra.mxu0 %v245
  %v281 = vpop.f32.mrf.mxu0
  %v282 = vadd.f32 %v211, %v281
  %v283 = vpop.f32.mrf.mxu0
  %v284 = vadd.f32 %v211, %v283
  %285 = vmatmul.bf16.gmra.mxu0 %v248
  %v286 = vpop.f32.mrf.mxu0
  %v287 = vadd.f32 %v211, %v286
  %v288 = vpop.f32.mrf.mxu0
  %v289 = vadd.f32 %v211, %v288
  %290 = vmatmul.bf16.gmra.mxu0 %v251
  %v291 = vpop.f32.mrf.mxu0
  %v292 = vadd.f32 %v211, %v291
  %v293 = vpop.f32.mrf.mxu0
  %v294 = vadd.f32 %v211, %v293
  %295 = vmatmul.bf16.gmra.mxu0 %v254
  %v296 = vpop.f32.mrf.mxu0
  %v297 = vadd.f32 %v211, %v296
  %v298 = vpop.f32.mrf.mxu0
  %v299 = vadd.f32 %v211, %v298
  %300 = vmatmul.bf16.gmra.mxu0 %v257
  %v301 = vpop.f32.mrf.mxu0
  %v302 = vadd.f32 %v211, %v301
  %v303 = vpop.f32.mrf.mxu0
  %v304 = vadd.f32 %v211, %v303
  %305 = vmatmul.bf16.gmra.mxu0 %v260
  %v306 = vpop.f32.mrf.mxu0
  %v307 = vadd.f32 %v211, %v306
  %v308 = vpop.f32.mrf.mxu0
  %v309 = vadd.f32 %v211, %v308
  %310 = vdwg.mxu0
  %v311 = vmax.f32 %v272, 0.0
  %v312 = vmax.f32 %v274, 0.0
  %v313 = vmax.f32 %v277, 0.0
  %v314 = vmax.f32 %v279, 0.0
  %v315 = vmax.f32 %v282, 0.0
  %v316 = vmax.f32 %v284, 0.0
  %v317 = vmax.f32 %v287, 0.0
  %v318 = vmax.f32 %v289, 0.0
  %v319 = vmax.f32 %v292, 0.0
  %v320 = vmax.f32 %v294, 0.0
  %v321 = vmax.f32 %v297, 0.0
  %v322 = vmax.f32 %v299, 0.0
  %v323 = vmax.f32 %v302, 0.0
  %v324 = vmax.f32 %v304, 0.0
  %v325 = vmax.f32 %v307, 0.0
  %v326 = vmax.f32 %v309, 0.0
  %v327 = vpack.c.bf16 %v312, %v311
  %v328 = vpack.c.bf16 %v314, %v313
  %v329 = vpack.c.bf16 %v316, %v315
  %v330 = vpack.c.bf16 %v318, %v317
  %v331 = vpack.c.bf16 %v320, %v319
  %v332 = vpack.c.bf16 %v322, %v321
  %v333 = vpack.c.bf16 %v324, %v323
  %v334 = vpack.c.bf16 %v326, %v325
  %v335 = vld [vmem:[%s3] sm:$0xf]
  %v336 = vld [vmem:[%s3 + $0x4] sm:$0xf]
  %v337 = vld [vmem:[%s3 + $0x8] sm:$0xf]
  %v338 = vld [vmem:[%s3 + $0xc] sm:$0xf]
  %v339 = vld [vmem:[%s3 + $0x10] sm:$0xf]
  %v340 = vld [vmem:[%s3 + $0x14] sm:$0xf]
  %v341 = vld [vmem:[%s3 + $0x18] sm:$0xf]
  %v342 = vld [vmem:[%s3 + $0x1c] sm:$0xf]
  %v343 = vld [vmem:[%s6] sm:$0x1]
  %v345 = vperm.slane %v343, 0
  %v355 = vunpack.c.l.b16 %v335
  %v356 = vunpack.c.l.b16 %v336
  %v357 = vunpack.c.l.b16 %v337
  %v358 = vunpack.c.l.b16 %v338
  %v359 = vunpack.c.l.b16 %v339
  %v360 = vunpack.c.l.b16 %v340
  %v361 = vunpack.c.l.b16 %v341
  %v362 = vunpack.c.l.b16 %v342
  %v363 = vpack.c.b16 %v356, %v355
  %v364 = vpack.c.b16 %v358, %v357
  %v365 = vpack.c.b16 %v360, %v359
  %v366 = vpack.c.b16 %v362, %v361
  %v372 = vsel %vm237, %v327, 0
  %v375 = vsel %vm237, %v328, 0
  %v378 = vsel %vm237, %v329, 0
  %v381 = vsel %vm237, %v330, 0
  %v384 = vsel %vm237, %v331, 0
  %v387 = vsel %vm237, %v332, 0
  %v390 = vsel %vm237, %v333, 0
  %v393 = vsel %vm237, %v334, 0
  %395 = vmatpush.bf16.msra.mxu0 0
  %396 = vmatpush.bf16.msra.mxu0 0
  %397 = vmatpush.bf16.msra.mxu0 0
  %398 = vmatpush.bf16.msra.mxu0 0
  %399 = vmatpush.bf16.msra.mxu0 %v366
  %400 = vmatpush.bf16.msra.mxu0 %v365
  %401 = vmatpush.bf16.msra.mxu0 %v364
  %402 = vmatpush.bf16.msra.mxu0 %v363
  %403 = vmatmul.bf16.gmra.mxu0 %v372
  %v404 = vpop.f32.mrf.mxu0
  %v405 = vadd.f32 %v345, %v404
  %v406 = vpop.f32.mrf.mxu0
  %v407 = vadd.f32 %v345, %v406
  %408 = vmatmul.bf16.gmra.mxu0 %v375
  %v409 = vpop.f32.mrf.mxu0
  %v410 = vadd.f32 %v345, %v409
  %v411 = vpop.f32.mrf.mxu0
  %v412 = vadd.f32 %v345, %v411
  %413 = vmatmul.bf16.gmra.mxu0 %v378
  %v414 = vpop.f32.mrf.mxu0
  %v415 = vadd.f32 %v345, %v414
  %v416 = vpop.f32.mrf.mxu0
  %v417 = vadd.f32 %v345, %v416
  %418 = vmatmul.bf16.gmra.mxu0 %v381
  %v419 = vpop.f32.mrf.mxu0
  %v420 = vadd.f32 %v345, %v419
  %v421 = vpop.f32.mrf.mxu0
  %v422 = vadd.f32 %v345, %v421
  %423 = vmatmul.bf16.gmra.mxu0 %v384
  %v424 = vpop.f32.mrf.mxu0
  %v425 = vadd.f32 %v345, %v424
  %v426 = vpop.f32.mrf.mxu0
  %v427 = vadd.f32 %v345, %v426
  %428 = vmatmul.bf16.gmra.mxu0 %v387
  %v429 = vpop.f32.mrf.mxu0
  %v430 = vadd.f32 %v345, %v429
  %v431 = vpop.f32.mrf.mxu0
  %v432 = vadd.f32 %v345, %v431
  %433 = vmatmul.bf16.gmra.mxu0 %v390
  %v434 = vpop.f32.mrf.mxu0
  %v435 = vadd.f32 %v345, %v434
  %v436 = vpop.f32.mrf.mxu0
  %v437 = vadd.f32 %v345, %v436
  %438 = vmatmul.bf16.gmra.mxu0 %v393
  %v439 = vpop.f32.mrf.mxu0
  %v440 = vadd.f32 %v345, %v439
  %v441 = vpop.f32.mrf.mxu0
  %v442 = vadd.f32 %v345, %v441
  %443 = vdwg.mxu0
  %v444 = vmax.f32 %v405, 0.0
  %v445 = vmax.f32 %v407, 0.0
  %v446 = vmax.f32 %v410, 0.0
  %v447 = vmax.f32 %v412, 0.0
  %v448 = vmax.f32 %v415, 0.0
  %v449 = vmax.f32 %v417, 0.0
  %v450 = vmax.f32 %v420, 0.0
  %v451 = vmax.f32 %v422, 0.0
  %v452 = vmax.f32 %v425, 0.0
  %v453 = vmax.f32 %v427, 0.0
  %v454 = vmax.f32 %v430, 0.0
  %v455 = vmax.f32 %v432, 0.0
  %v456 = vmax.f32 %v435, 0.0
  %v457 = vmax.f32 %v437, 0.0
  %v458 = vmax.f32 %v440, 0.0
  %v459 = vmax.f32 %v442, 0.0
  %vm460 = vcmask 130048
  %461 = vst.msk [vmem:[%s7] sm:$0xff] %vm460, %v444
  %462 = vst.msk [vmem:[%s7 + $0x8] sm:$0xff] %vm460, %v445
  %463 = vst.msk [vmem:[%s7 + $0x10] sm:$0xff] %vm460, %v446
  %464 = vst.msk [vmem:[%s7 + $0x18] sm:$0xff] %vm460, %v447
  %465 = vst.msk [vmem:[%s7 + $0x20] sm:$0xff] %vm460, %v448
  %466 = vst.msk [vmem:[%s7 + $0x28] sm:$0xff] %vm460, %v449
  %467 = vst.msk [vmem:[%s7 + $0x30] sm:$0xff] %vm460, %v450
  %468 = vst.msk [vmem:[%s7 + $0x38] sm:$0xff] %vm460, %v451
  %469 = vst.msk [vmem:[%s7 + $0x40] sm:$0xff] %vm460, %v452
  %470 = vst.msk [vmem:[%s7 + $0x48] sm:$0xff] %vm460, %v453
  %471 = vst.msk [vmem:[%s7 + $0x50] sm:$0xff] %vm460, %v454
  %472 = vst.msk [vmem:[%s7 + $0x58] sm:$0xff] %vm460, %v455
  %473 = vst.msk [vmem:[%s7 + $0x60] sm:$0xff] %vm460, %v456
  %474 = vst.msk [vmem:[%s7 + $0x68] sm:$0xff] %vm460, %v457
  %475 = vst.msk [vmem:[%s7 + $0x70] sm:$0xff] %vm460, %v458
  %476 = vst.msk [vmem:[%s7 + $0x78] sm:$0xff] %vm460, %v459
  // Predicated region
  $region30: #{tpu_custom_call.1} parent=0 // pred_check
    _
  $region31: #{tpu_custom_call.1} parent=0 // pred_check_branch
    %478 = sbr.rel (0) target = $region33
  $region32: #{tpu_custom_call.1} parent=0 // pred_region
    _
  $region33: #{tpu_custom_call.1} parent=0 // pred_fallthru
    _
  // Predicated region
  $region34: #{tpu_custom_call.1} parent=0 // pred_check
    _
  $region35: #{tpu_custom_call.1} parent=0 // pred_check_branch
    %480 = sbr.rel (0) target = $region37
  $region36: #{tpu_custom_call.1} parent=0 // pred_region
    _
  $region37: #{tpu_custom_call.1} parent=0 // pred_fallthru
    _

</llo_original>
